<compile_context>
chip_gen: v7x
topology: tpu7x:2x2x1
jax: 0.10.0
libtpu: 0.0.40
codegen_flags: <defaults>
</compile_context>

<pallas_src>
import jax
import jax.numpy as jnp
from jax.experimental import pallas as pl
from jax.experimental.pallas import tpu as pltpu

EPS = 1e-5


def _relu_conv1x1_bn_kernel(x_ref, w_ref, gb_ref, o_ref):
    # x_ref:  [M, C_in]      (M = N*H*W, lane-dense rows of C_in)
    # w_ref:  [C_in, C_out]  (1x1 conv weight, transposed -> lane-dense in C_out)
    # gb_ref: [2, C_out]     (row 0 = gamma, row 1 = beta)
    # o_ref:  [M, C_out]     (lane-dense output)
    x = jnp.maximum(x_ref[...], 0.0)                               # ReLU (VPU)
    # 1x1 conv as matmul on the MXU: y[m, c] = sum_k x[m, k] * w[k, c]
    y = jnp.dot(x, w_ref[...], preferred_element_type=jnp.float32)  # [M, C_out]

    m = jnp.float32(y.shape[0])
    mean = jnp.sum(y, axis=0, keepdims=True) / m                   # [1, C_out]
    d = y - mean
    var = jnp.sum(d * d, axis=0, keepdims=True) / m                # two-pass (stable)

    gb = gb_ref[...]
    gamma = gb[0:1, :]                                             # [1, C_out]
    beta = gb[1:2, :]                                              # [1, C_out]
    scale = gamma * jax.lax.rsqrt(var + EPS)                       # [1, C_out]

    o_ref[...] = d * scale + beta                                  # fused BN epilogue


def relu_conv1x1_bn(x_nchw, weight, gamma, beta):
    """x_nchw: [N, C_in, H, W] f32; weight: [C_out, C_in] (1x1 conv kernel squeezed).

    Returns [N, C_out, H, W] f32, matching BatchNorm2d(Conv2d(ReLU(x))) in
    PyTorch training mode (batch statistics).
    """
    n, c_in, h, w = x_nchw.shape
    c_out = weight.shape[0]
    m = n * h * w

    # NCHW -> NHWC -> [M, C_in]: lane-dense activation for the kernel.
    x_mat = jnp.transpose(x_nchw, (0, 2, 3, 1)).reshape(m, c_in)
    w_t = jnp.transpose(weight)                    # [C_in, C_out], lane-dense
    gb = jnp.stack([gamma, beta], axis=0)          # [2, C_out]

    out_mat = pl.pallas_call(
        _relu_conv1x1_bn_kernel,
        out_shape=jax.ShapeDtypeStruct((m, c_out), jnp.float32),
        in_specs=[
            pl.BlockSpec((m, c_in), lambda: (0, 0)),
            pl.BlockSpec((c_in, c_out), lambda: (0, 0)),
            pl.BlockSpec((2, c_out), lambda: (0, 0)),
        ],
        out_specs=pl.BlockSpec((m, c_out), lambda: (0, 0)),
        compiler_params=pltpu.CompilerParams(vmem_limit_bytes=8 << 20),
    )(x_mat, w_t, gb)

    # [M, C_out] -> NHWC -> NCHW.
    return jnp.transpose(out_mat.reshape(n, h, w, c_out), (0, 3, 1, 2))


if __name__ == "__main__":
    key = jax.random.PRNGKey(0)
    k_x, k_w, k_g, k_b = jax.random.split(key, 4)

    # Shapes implied by the module: input [1, 960, 7, 7], conv 960 -> 128 (1x1).
    N, C_IN, H, W = 1, 960, 7, 7
    C_OUT = 128

    x = jax.random.normal(k_x, (N, C_IN, H, W), dtype=jnp.float32)
    # Deterministic synthetic parameters (shapes from the module's __init__).
    weight = jax.random.normal(k_w, (C_OUT, C_IN), dtype=jnp.float32) * 0.02
    gamma = 1.0 + 0.1 * jax.random.normal(k_g, (C_OUT,), dtype=jnp.float32)
    beta = 0.1 * jax.random.normal(k_b, (C_OUT,), dtype=jnp.float32)

    out = relu_conv1x1_bn(x, weight, gamma, beta)
    jax.block_until_ready(out)

    # Pure-JAX reference (two-pass BN, highest-precision matmul) to cross-check.
    x_mat = jnp.transpose(x, (0, 2, 3, 1)).reshape(N * H * W, C_IN)
    y_ref = jnp.dot(jnp.maximum(x_mat, 0.0), weight.T,
                    precision=jax.lax.Precision.HIGHEST)          # [M, C_OUT]
    mu = y_ref.mean(axis=0, keepdims=True)
    var = ((y_ref - mu) ** 2).mean(axis=0, keepdims=True)
    ref = (y_ref - mu) / jnp.sqrt(var + EPS) * gamma[None, :] + beta[None, :]
    ref = jnp.transpose(ref.reshape(N, H, W, C_OUT), (0, 3, 1, 2))

    assert out.shape == (N, C_OUT, H, W)
    assert jnp.allclose(out, ref, atol=1e-3, rtol=1e-3), "mismatch vs reference"

    # TODO(synk): BatchNorm running_mean/running_var buffer updates are not
    # computed (only the forward activation is produced).
    print("KERNEL_OK")
</pallas_src>

<mosaic_0001>
module attributes {stable_mosaic.version = 11 : i64} {
  func.func @_relu_conv1x1_bn_kernel(%arg0: memref<49x960xf32, #tpu.memory_space<vmem>>, %arg1: memref<960x128xf32, #tpu.memory_space<vmem>>, %arg2: memref<2x128xf32, #tpu.memory_space<vmem>>, %arg3: memref<49x128xf32, #tpu.memory_space<vmem>>) attributes {dimension_semantics = [], scalar_prefetch = 0 : i64, scratch_operands = 0 : i64, tpu.core_type = #tpu.core_type<tc>} {
    %c0 = arith.constant 0 : index
    %c0_0 = arith.constant 0 : index
    %0 = vector.load %arg0[%c0, %c0_0] : memref<49x960xf32, #tpu.memory_space<vmem>>, vector<49x960xf32>
    %cst = arith.constant 0.000000e+00 : f32
    %1 = vector.broadcast %cst : f32 to vector<49x960xf32>
    %2 = arith.maximumf %0, %1 : vector<49x960xf32>
    %c0_1 = arith.constant 0 : index
    %c0_2 = arith.constant 0 : index
    %3 = vector.load %arg1[%c0_1, %c0_2] : memref<960x128xf32, #tpu.memory_space<vmem>>, vector<960x128xf32>
    %cst_3 = arith.constant dense<0.000000e+00> : vector<49x128xf32>
    %4 = tpu.matmul %2, %3, %cst_3 {dimension_numbers = #tpu.dot_dimension_numbers<[1], [0], [0], [1], [0, 0, 1, 1], [], []>} : vector<49x960xf32>, vector<960x128xf32>, vector<49x128xf32> -> vector<49x128xf32>
    %cst_4 = arith.constant dense<0.000000e+00> : vector<128xf32>
    %5 = vector.multi_reduction <add>, %4, %cst_4 [0] : vector<49x128xf32> to vector<128xf32>
    %6 = vector.shape_cast %5 : vector<128xf32> to vector<1x128xf32>
    %cst_5 = arith.constant 4.900000e+01 : f32
    %7 = vector.broadcast %cst_5 : f32 to vector<1x128xf32>
    %8 = arith.divf %6, %7 : vector<1x128xf32>
    %9 = vector.broadcast %8 : vector<1x128xf32> to vector<49x128xf32>
    %10 = arith.subf %4, %9 : vector<49x128xf32>
    %11 = arith.mulf %10, %10 : vector<49x128xf32>
    %cst_6 = arith.constant dense<0.000000e+00> : vector<128xf32>
    %12 = vector.multi_reduction <add>, %11, %cst_6 [0] : vector<49x128xf32> to vector<128xf32>
    %13 = vector.shape_cast %12 : vector<128xf32> to vector<1x128xf32>
    %cst_7 = arith.constant 4.900000e+01 : f32
    %14 = vector.broadcast %cst_7 : f32 to vector<1x128xf32>
    %15 = arith.divf %13, %14 : vector<1x128xf32>
    %c0_8 = arith.constant 0 : index
    %c0_9 = arith.constant 0 : index
    %16 = vector.load %arg2[%c0_8, %c0_9] : memref<2x128xf32, #tpu.memory_space<vmem>>, vector<2x128xf32>
    %17 = vector.extract_strided_slice %16 {offsets = [0, 0], sizes = [1, 128], strides = [1, 1]} : vector<2x128xf32> to vector<1x128xf32>
    %18 = vector.extract_strided_slice %16 {offsets = [1, 0], sizes = [1, 128], strides = [1, 1]} : vector<2x128xf32> to vector<1x128xf32>
    %cst_10 = arith.constant 9.99999974E-6 : f32
    %19 = vector.broadcast %cst_10 : f32 to vector<1x128xf32>
    %20 = arith.addf %15, %19 : vector<1x128xf32>
    %21 = math.rsqrt %20 : vector<1x128xf32>
    %22 = arith.mulf %17, %21 : vector<1x128xf32>
    %23 = vector.broadcast %22 : vector<1x128xf32> to vector<49x128xf32>
    %24 = arith.mulf %10, %23 : vector<49x128xf32>
    %25 = vector.broadcast %18 : vector<1x128xf32> to vector<49x128xf32>
    %26 = arith.addf %24, %25 : vector<49x128xf32>
    %c0_11 = arith.constant 0 : index
    %c0_12 = arith.constant 0 : index
    %27 = vector.load %arg3[%c0_11, %c0_12] : memref<49x128xf32, #tpu.memory_space<vmem>>, vector<49x128xf32>
    tpu.vector_store %arg3[%c0_11, %c0_12], %26 {strides = array<i32>} : memref<49x128xf32, #tpu.memory_space<vmem>>, vector<49x128xf32>,
    return
  }
}

</mosaic_0001>

<llo_original>
// kernel: tpu_custom_call.1
$region0: #{tpu_custom_call.1}
  #allocation0 [shape = 'u32[]', space=smem, size = 0x4, offset = 0x4, fixed_abs, tag = 'smem constant byte address 0x4 - core index']
  #allocation1 [shape = 'u32[144,128]{1,0:T(1,128)}', space=vmem, size = 0x12000, scoped, tag = 'internal scratch']
  %s0 = inlined_call_operand.hbm [shape: f32[49,960], index: 0, kind: input, shape index: {}]
  %s1 = inlined_call_operand.hbm [shape: f32[960,128], index: 1, kind: input, shape index: {}]
  %s2 = inlined_call_operand.vmem [shape: f32[2,128], index: 2, kind: input, shape index: {}]
  %s3 = inlined_call_operand.hbm [shape: f32[49,128], index: 3, kind: output, shape index: {}]
  %s4 = sld [smem:[#allocation0]]
  $region30: #{tpu_custom_call.1} parent=0
    _
  %s6 = ssub.s32 1, %s4
  %s7 = scalar_select 0, %s6, %s4
  $region1: #{tpu_custom_call.1} parent=0
    #allocation2 [shape = 'u8[229376]{0}', space=vmem, size = 0x38000, scoped, tag = 'input window, operand 0, single buffered']
    #allocation3 [shape = 's32[1]{0}', space=sflag, size = 0x4, scoped, tag = 'scoped memory for tpu_custom_call.1']
    #allocation4 [shape = 's32[1]{0}', space=sflag, size = 0x4, scoped, tag = 'scoped memory for tpu_custom_call.1']
    #allocation5 [shape = 'u8[491520]{0}', space=vmem, size = 0x78000, scoped, tag = 'input window, operand 1, single buffered']
    #allocation6 [shape = 's32[1]{0}', space=sflag, size = 0x4, scoped, tag = 'scoped memory for tpu_custom_call.1']
    #allocation7 [shape = 'u8[28672]{0}', space=vmem, size = 0x7000, scoped, tag = 'output window, operand 0, single buffered']
    %8 = vsyncpa [#allocation3], 0
    %9 = vsyncpa [#allocation6], 0
    %10 = vsyncpa [#allocation4], 0
    // Predicated region
    $region2: #{tpu_custom_call.1} parent=1 // pred_check
      _
    $region3: #{tpu_custom_call.1} parent=1 // pred_check_branch
      %12 = sbr.rel (0) target = $region5
    $region4: #{tpu_custom_call.1} parent=1 // pred_region
      %s14 = ssub.s32 7168, 7168
      %15 = vsyncadd [#allocation3], %s14
      %s16 = sshll.u32 [#allocation2], 4
      %s17 = int_to_ptr.vmem [resolvable:$true] %s16
      %22 = dma.hbm_to_vmem [thread:$0]  %s0, 7168, %s17, [#allocation3], 1024, 1024, 64
    $region5: #{tpu_custom_call.1} parent=1 // pred_fallthru
      _
    // Predicated region
    $region6: #{tpu_custom_call.1} parent=1 // pred_check
      _
    $region7: #{tpu_custom_call.1} parent=1 // pred_check_branch
      %24 = sbr.rel (0) target = $region9
    $region8: #{tpu_custom_call.1} parent=1 // pred_region
      %s26 = ssub.s32 15360, 15360
      %27 = vsyncadd [#allocation6], %s26
      %s28 = sshll.u32 [#allocation5], 4
      %s29 = int_to_ptr.vmem [resolvable:$true] %s28
      %34 = dma.hbm_to_vmem [thread:$0]  %s1, 15360, %s29, [#allocation6], 128, 128, 8
    $region9: #{tpu_custom_call.1} parent=1 // pred_fallthru
      _
    // Predicated region
    $region10: #{tpu_custom_call.1} parent=1 // pred_check
      _
    $region11: #{tpu_custom_call.1} parent=1 // pred_check_branch
      %36 = sbr.rel (0) target = $region13
    $region12: #{tpu_custom_call.1} parent=1 // pred_region
      _
    $region13: #{tpu_custom_call.1} parent=1 // pred_fallthru
      _
    // Predicated region
    $region14: #{tpu_custom_call.1} parent=1 // pred_check
      _
    $region15: #{tpu_custom_call.1} parent=1 // pred_check_branch
      %38 = sbr.rel (0) target = $region17
    $region16: #{tpu_custom_call.1} parent=1 // pred_region
      %39 = dma.done [#allocation3], 7168
    $region17: #{tpu_custom_call.1} parent=1 // pred_fallthru
      _
    // Predicated region
    $region18: #{tpu_custom_call.1} parent=1 // pred_check
      _
    $region19: #{tpu_custom_call.1} parent=1 // pred_check_branch
      %41 = sbr.rel (0) target = $region21
    $region20: #{tpu_custom_call.1} parent=1 // pred_region
      %42 = dma.done [#allocation6], 15360
    $region21: #{tpu_custom_call.1} parent=1 // pred_fallthru
      _
    %v43 = vld [vmem:[#allocation2] sm:$0xff]
    %v44 = vld [vmem:[#allocation2 + $0x8] sm:$0xff]
    %v45 = vld [vmem:[#allocation2 + $0x10] sm:$0xff]
    %v46 = vld [vmem:[#allocation2 + $0x18] sm:$0xff]
    %v47 = vld [vmem:[#allocation2 + $0x20] sm:$0xff]
    %v48 = vld [vmem:[#allocation2 + $0x28] sm:$0xff]
    %v49 = vld [vmem:[#allocation2 + $0x30] sm:$0xff]
    %v50 = vld [vmem:[#allocation2 + $0x38] sm:$0xff]
    %v51 = vld [vmem:[#allocation2 + $0x40] sm:$0xff]
    %v52 = vld [vmem:[#allocation2 + $0x48] sm:$0xff]
    %v53 = vld [vmem:[#allocation2 + $0x50] sm:$0xff]
    %v54 = vld [vmem:[#allocation2 + $0x58] sm:$0xff]
    %v55 = vld [vmem:[#allocation2 + $0x60] sm:$0xff]
    %v56 = vld [vmem:[#allocation2 + $0x68] sm:$0xff]
    %v57 = vld [vmem:[#allocation2 + $0x70] sm:$0xff]
    %v58 = vld [vmem:[#allocation2 + $0x78] sm:$0xff]
    %v59 = vld [vmem:[#allocation2 + $0x80] sm:$0xff]
    %v60 = vld [vmem:[#allocation2 + $0x88] sm:$0xff]
    %v61 = vld [vmem:[#allocation2 + $0x90] sm:$0xff]
    %v62 = vld [vmem:[#allocation2 + $0x98] sm:$0xff]
    %v63 = vld [vmem:[#allocation2 + $0xa0] sm:$0xff]
    %v64 = vld [vmem:[#allocation2 + $0xa8] sm:$0xff]
    %v65 = vld [vmem:[#allocation2 + $0xb0] sm:$0xff]
    %v66 = vld [vmem:[#allocation2 + $0xb8] sm:$0xff]
    %v67 = vld [vmem:[#allocation2 + $0xc0] sm:$0xff]
    %v68 = vld [vmem:[#allocation2 + $0xc8] sm:$0xff]
    %v69 = vld [vmem:[#allocation2 + $0xd0] sm:$0xff]
    %v70 = vld [vmem:[#allocation2 + $0xd8] sm:$0xff]
    %v71 = vld [vmem:[#allocation2 + $0xe0] sm:$0xff]
    %v72 = vld [vmem:[#allocation2 + $0xe8] sm:$0xff]
    %v73 = vld [vmem:[#allocation2 + $0xf0] sm:$0xff]
    %v74 = vld [vmem:[#allocation2 + $0xf8] sm:$0xff]
    %v75 = vld [vmem:[#allocation2 + $0x100] sm:$0xff]
    %v76 = vld [vmem:[#allocation2 + $0x108] sm:$0xff]
    %v77 = vld [vmem:[#allocation2 + $0x110] sm:$0xff]
    %v78 = vld [vmem:[#allocation2 + $0x118] sm:$0xff]
    %v79 = vld [vmem:[#allocation2 + $0x120] sm:$0xff]
    %v80 = vld [vmem:[#allocation2 + $0x128] sm:$0xff]
    %v81 = vld [vmem:[#allocation2 + $0x130] sm:$0xff]
    %v82 = vld [vmem:[#allocation2 + $0x138] sm:$0xff]
    %v83 = vld [vmem:[#allocation2 + $0x140] sm:$0xff]
    %v84 = vld [vmem:[#allocation2 + $0x148] sm:$0xff]
    %v85 = vld [vmem:[#allocation2 + $0x150] sm:$0xff]
    %v86 = vld [vmem:[#allocation2 + $0x158] sm:$0xff]
    %v87 = vld [vmem:[#allocation2 + $0x160] sm:$0xff]
    %v88 = vld [vmem:[#allocation2 + $0x168] sm:$0xff]
    %v89 = vld [vmem:[#allocation2 + $0x170] sm:$0xff]
    %v90 = vld [vmem:[#allocation2 + $0x178] sm:$0xff]
    %v91 = vld [vmem:[#allocation2 + $0x180] sm:$0x1]
    %v92 = vld [vmem:[#allocation2 + $0x188] sm:$0x1]
    %v93 = vld [vmem:[#allocation2 + $0x190] sm:$0x1]
    %v94 = vld [vmem:[#allocation2 + $0x198] sm:$0x1]
    %v95 = vld [vmem:[#allocation2 + $0x1a0] sm:$0x1]
    %v96 = vld [vmem:[#allocation2 + $0x1a8] sm:$0x1]
    %v97 = vld [vmem:[#allocation2 + $0x1b0] sm:$0x1]
    %v98 = vld [vmem:[#allocation2 + $0x1b8] sm:$0x1]
    %v99 = vmax.f32 %v43, 0.0
    %v100 = vmax.f32 %v44, 0.0
    %v101 = vmax.f32 %v45, 0.0
    %v102 = vmax.f32 %v46, 0.0
    %v103 = vmax.f32 %v47, 0.0
    %v104 = vmax.f32 %v48, 0.0
    %v105 = vmax.f32 %v49, 0.0
    %v106 = vmax.f32 %v50, 0.0
    %v107 = vmax.f32 %v51, 0.0
    %v108 = vmax.f32 %v52, 0.0
    %v109 = vmax.f32 %v53, 0.0
    %v110 = vmax.f32 %v54, 0.0
    %v111 = vmax.f32 %v55, 0.0
    %v112 = vmax.f32 %v56, 0.0
    %v113 = vmax.f32 %v57, 0.0
    %v114 = vmax.f32 %v58, 0.0
    %v115 = vmax.f32 %v59, 0.0
    %v116 = vmax.f32 %v60, 0.0
    %v117 = vmax.f32 %v61, 0.0
    %v118 = vmax.f32 %v62, 0.0
    %v119 = vmax.f32 %v63, 0.0
    %v120 = vmax.f32 %v64, 0.0
    %v121 = vmax.f32 %v65, 0.0
    %v122 = vmax.f32 %v66, 0.0
    %v123 = vmax.f32 %v67, 0.0
    %v124 = vmax.f32 %v68, 0.0
    %v125 = vmax.f32 %v69, 0.0
    %v126 = vmax.f32 %v70, 0.0
    %v127 = vmax.f32 %v71, 0.0
    %v128 = vmax.f32 %v72, 0.0
    %v129 = vmax.f32 %v73, 0.0
    %v130 = vmax.f32 %v74, 0.0
    %v131 = vmax.f32 %v75, 0.0
    %v132 = vmax.f32 %v76, 0.0
    %v133 = vmax.f32 %v77, 0.0
    %v134 = vmax.f32 %v78, 0.0
    %v135 = vmax.f32 %v79, 0.0
    %v136 = vmax.f32 %v80, 0.0
    %v137 = vmax.f32 %v81, 0.0
    %v138 = vmax.f32 %v82, 0.0
    %v139 = vmax.f32 %v83, 0.0
    %v140 = vmax.f32 %v84, 0.0
    %v141 = vmax.f32 %v85, 0.0
    %v142 = vmax.f32 %v86, 0.0
    %v143 = vmax.f32 %v87, 0.0
    %v144 = vmax.f32 %v88, 0.0
    %v145 = vmax.f32 %v89, 0.0
    %v146 = vmax.f32 %v90, 0.0
    %v147 = vmax.f32 %v91, 0.0
    %v148 = vmax.f32 %v92, 0.0
    %v149 = vmax.f32 %v93, 0.0
    %v150 = vmax.f32 %v94, 0.0
    %v151 = vmax.f32 %v95, 0.0
    %v152 = vmax.f32 %v96, 0.0
    %v153 = vmax.f32 %v97, 0.0
    %v154 = vmax.f32 %v98, 0.0
    %v155 = vld [vmem:[#allocation5] sm:$0xff]
    %v156 = vld [vmem:[#allocation5 + $0x8] sm:$0xff]
    %v157 = vld [vmem:[#allocation5 + $0x10] sm:$0xff]
    %v158 = vld [vmem:[#allocation5 + $0x18] sm:$0xff]
    %v159 = vld [vmem:[#allocation5 + $0x20] sm:$0xff]
    %v160 = vld [vmem:[#allocation5 + $0x28] sm:$0xff]
    %v161 = vld [vmem:[#allocation5 + $0x30] sm:$0xff]
    %v162 = vld [vmem:[#allocation5 + $0x38] sm:$0xff]
    %v163 = vld [vmem:[#allocation5 + $0x40] sm:$0xff]
    %v164 = vld [vmem:[#allocation5 + $0x48] sm:$0xff]
    %v165 = vld [vmem:[#allocation5 + $0x50] sm:$0xff]
    %v166 = vld [vmem:[#allocation5 + $0x58] sm:$0xff]
    %v167 = vld [vmem:[#allocation5 + $0x60] sm:$0xff]
    %v168 = vld [vmem:[#allocation5 + $0x68] sm:$0xff]
    %v169 = vld [vmem:[#allocation5 + $0x70] sm:$0xff]
    %v170 = vld [vmem:[#allocation5 + $0x78] sm:$0xff]
    %v171 = vld [vmem:[#allocation5 + $0x80] sm:$0xff]
    %v172 = vld [vmem:[#allocation5 + $0x88] sm:$0xff]
    %v173 = vld [vmem:[#allocation5 + $0x90] sm:$0xff]
    %v174 = vld [vmem:[#allocation5 + $0x98] sm:$0xff]
    %v175 = vld [vmem:[#allocation5 + $0xa0] sm:$0xff]
    %v176 = vld [vmem:[#allocation5 + $0xa8] sm:$0xff]
    %v177 = vld [vmem:[#allocation5 + $0xb0] sm:$0xff]
    %v178 = vld [vmem:[#allocation5 + $0xb8] sm:$0xff]
    %v179 = vld [vmem:[#allocation5 + $0xc0] sm:$0xff]
    %v180 = vld [vmem:[#allocation5 + $0xc8] sm:$0xff]
    %v181 = vld [vmem:[#allocation5 + $0xd0] sm:$0xff]
    %v182 = vld [vmem:[#allocation5 + $0xd8] sm:$0xff]
    %v183 = vld [vmem:[#allocation5 + $0xe0] sm:$0xff]
    %v184 = vld [vmem:[#allocation5 + $0xe8] sm:$0xff]
    %v185 = vld [vmem:[#allocation5 + $0xf0] sm:$0xff]
    %v186 = vld [vmem:[#allocation5 + $0xf8] sm:$0xff]
    %v187 = vld [vmem:[#allocation5 + $0x100] sm:$0xff]
    %v188 = vld [vmem:[#allocation5 + $0x108] sm:$0xff]
    %v189 = vld [vmem:[#allocation5 + $0x110] sm:$0xff]
    %v190 = vld [vmem:[#allocation5 + $0x118] sm:$0xff]
    %v191 = vld [vmem:[#allocation5 + $0x120] sm:$0xff]
    %v192 = vld [vmem:[#allocation5 + $0x128] sm:$0xff]
    %v193 = vld [vmem:[#allocation5 + $0x130] sm:$0xff]
    %v194 = vld [vmem:[#allocation5 + $0x138] sm:$0xff]
    %v195 = vld [vmem:[#allocation5 + $0x140] sm:$0xff]
    %v196 = vld [vmem:[#allocation5 + $0x148] sm:$0xff]
    %v197 = vld [vmem:[#allocation5 + $0x150] sm:$0xff]
    %v198 = vld [vmem:[#allocation5 + $0x158] sm:$0xff]
    %v199 = vld [vmem:[#allocation5 + $0x160] sm:$0xff]
    %v200 = vld [vmem:[#allocation5 + $0x168] sm:$0xff]
    %v201 = vld [vmem:[#allocation5 + $0x170] sm:$0xff]
    %v202 = vld [vmem:[#allocation5 + $0x178] sm:$0xff]
    %v203 = vld [vmem:[#allocation5 + $0x180] sm:$0xff]
    %v204 = vld [vmem:[#allocation5 + $0x188] sm:$0xff]
    %v205 = vld [vmem:[#allocation5 + $0x190] sm:$0xff]
    %v206 = vld [vmem:[#allocation5 + $0x198] sm:$0xff]
    %v207 = vld [vmem:[#allocation5 + $0x1a0] sm:$0xff]
    %v208 = vld [vmem:[#allocation5 + $0x1a8] sm:$0xff]
    %v209 = vld [vmem:[#allocation5 + $0x1b0] sm:$0xff]
    %v210 = vld [vmem:[#allocation5 + $0x1b8] sm:$0xff]
    %v211 = vld [vmem:[#allocation5 + $0x1c0] sm:$0xff]
    %v212 = vld [vmem:[#allocation5 + $0x1c8] sm:$0xff]
    %v213 = vld [vmem:[#allocation5 + $0x1d0] sm:$0xff]
    %v214 = vld [vmem:[#allocation5 + $0x1d8] sm:$0xff]
    %v215 = vld [vmem:[#allocation5 + $0x1e0] sm:$0xff]
    %v216 = vld [vmem:[#allocation5 + $0x1e8] sm:$0xff]
    %v217 = vld [vmem:[#allocation5 + $0x1f0] sm:$0xff]
    %v218 = vld [vmem:[#allocation5 + $0x1f8] sm:$0xff]
    %v219 = vld [vmem:[#allocation5 + $0x200] sm:$0xff]
    %v220 = vld [vmem:[#allocation5 + $0x208] sm:$0xff]
    %v221 = vld [vmem:[#allocation5 + $0x210] sm:$0xff]
    %v222 = vld [vmem:[#allocation5 + $0x218] sm:$0xff]
    %v223 = vld [vmem:[#allocation5 + $0x220] sm:$0xff]
    %v224 = vld [vmem:[#allocation5 + $0x228] sm:$0xff]
    %v225 = vld [vmem:[#allocation5 + $0x230] sm:$0xff]
    %v226 = vld [vmem:[#allocation5 + $0x238] sm:$0xff]
    %v227 = vld [vmem:[#allocation5 + $0x240] sm:$0xff]
    %v228 = vld [vmem:[#allocation5 + $0x248] sm:$0xff]
    %v229 = vld [vmem:[#allocation5 + $0x250] sm:$0xff]
    %v230 = vld [vmem:[#allocation5 + $0x258] sm:$0xff]
    %v231 = vld [vmem:[#allocation5 + $0x260] sm:$0xff]
    %v232 = vld [vmem:[#allocation5 + $0x268] sm:$0xff]
    %v233 = vld [vmem:[#allocation5 + $0x270] sm:$0xff]
    %v234 = vld [vmem:[#allocation5 + $0x278] sm:$0xff]
    %v235 = vld [vmem:[#allocation5 + $0x280] sm:$0xff]
    %v236 = vld [vmem:[#allocation5 + $0x288] sm:$0xff]
    %v237 = vld [vmem:[#allocation5 + $0x290] sm:$0xff]
    %v238 = vld [vmem:[#allocation5 + $0x298] sm:$0xff]
    %v239 = vld [vmem:[#allocation5 + $0x2a0] sm:$0xff]
    %v240 = vld [vmem:[#allocation5 + $0x2a8] sm:$0xff]
    %v241 = vld [vmem:[#allocation5 + $0x2b0] sm:$0xff]
    %v242 = vld [vmem:[#allocation5 + $0x2b8] sm:$0xff]
    %v243 = vld [vmem:[#allocation5 + $0x2c0] sm:$0xff]
    %v244 = vld [vmem:[#allocation5 + $0x2c8] sm:$0xff]
    %v245 = vld [vmem:[#allocation5 + $0x2d0] sm:$0xff]
    %v246 = vld [vmem:[#allocation5 + $0x2d8] sm:$0xff]
    %v247 = vld [vmem:[#allocation5 + $0x2e0] sm:$0xff]
    %v248 = vld [vmem:[#allocation5 + $0x2e8] sm:$0xff]
    %v249 = vld [vmem:[#allocation5 + $0x2f0] sm:$0xff]
    %v250 = vld [vmem:[#allocation5 + $0x2f8] sm:$0xff]
    %v251 = vld [vmem:[#allocation5 + $0x300] sm:$0xff]
    %v252 = vld [vmem:[#allocation5 + $0x308] sm:$0xff]
    %v253 = vld [vmem:[#allocation5 + $0x310] sm:$0xff]
    %v254 = vld [vmem:[#allocation5 + $0x318] sm:$0xff]
    %v255 = vld [vmem:[#allocation5 + $0x320] sm:$0xff]
    %v256 = vld [vmem:[#allocation5 + $0x328] sm:$0xff]
    %v257 = vld [vmem:[#allocation5 + $0x330] sm:$0xff]
    %v258 = vld [vmem:[#allocation5 + $0x338] sm:$0xff]
    %v259 = vld [vmem:[#allocation5 + $0x340] sm:$0xff]
    %v260 = vld [vmem:[#allocation5 + $0x348] sm:$0xff]
    %v261 = vld [vmem:[#allocation5 + $0x350] sm:$0xff]
    %v262 = vld [vmem:[#allocation5 + $0x358] sm:$0xff]
    %v263 = vld [vmem:[#allocation5 + $0x360] sm:$0xff]
    %v264 = vld [vmem:[#allocation5 + $0x368] sm:$0xff]
    %v265 = vld [vmem:[#allocation5 + $0x370] sm:$0xff]
    %v266 = vld [vmem:[#allocation5 + $0x378] sm:$0xff]
    %v267 = vld [vmem:[#allocation5 + $0x380] sm:$0xff]
    %v268 = vld [vmem:[#allocation5 + $0x388] sm:$0xff]
    %v269 = vld [vmem:[#allocation5 + $0x390] sm:$0xff]
    %v270 = vld [vmem:[#allocation5 + $0x398] sm:$0xff]
    %v271 = vld [vmem:[#allocation5 + $0x3a0] sm:$0xff]
    %v272 = vld [vmem:[#allocation5 + $0x3a8] sm:$0xff]
    %v273 = vld [vmem:[#allocation5 + $0x3b0] sm:$0xff]
    %v274 = vld [vmem:[#allocation5 + $0x3b8] sm:$0xff]
    %vm275 = vcmask 523264
    %v277 = vsel %vm275, %v106, 0
    %v280 = vsel %vm275, %v114, 0
    %v283 = vsel %vm275, %v122, 0
    %v286 = vsel %vm275, %v130, 0
    %v289 = vsel %vm275, %v138, 0
    %v292 = vsel %vm275, %v146, 0
    %v295 = vsel %vm275, %v154, 0
    %297 = vmatprep.subr.mxu0 0.0
    %298 = vmatpush1.msra.mxu0 %v155
    %299 = vmatprep.subr.mxu0 0.0
    %300 = vmatpush1.msra.mxu0 %v156
    %301 = vmatprep.subr.mxu0 0.0
    %302 = vmatpush1.msra.mxu0 %v157
    %303 = vmatprep.subr.mxu0 0.0
    %304 = vmatpush1.msra.mxu0 %v158
    %305 = vmatprep.subr.mxu0 0.0
    %306 = vmatpush1.msra.mxu0 %v159
    %307 = vmatprep.subr.mxu0 0.0
    %308 = vmatpush1.msra.mxu0 %v160
    %309 = vmatprep.subr.mxu0 0.0
    %310 = vmatpush1.msra.mxu0 %v161
    %311 = vmatprep.subr.mxu0 0.0
    %312 = vmatpush1.msra.mxu0 %v162
    %313 = vmatprep.subr.mxu0 0.0
    %314 = vmatpush1.msra.mxu0 %v163
    %315 = vmatprep.subr.mxu0 0.0
    %316 = vmatpush1.msra.mxu0 %v164
    %317 = vmatprep.subr.mxu0 0.0
    %318 = vmatpush1.msra.mxu0 %v165
    %319 = vmatprep.subr.mxu0 0.0
    %320 = vmatpush1.msra.mxu0 %v166
    %321 = vmatprep.subr.mxu0 0.0
    %322 = vmatpush1.msra.mxu0 %v167
    %323 = vmatprep.subr.mxu0 0.0
    %324 = vmatpush1.msra.mxu0 %v168
    %325 = vmatprep.subr.mxu0 0.0
    %326 = vmatpush1.msra.mxu0 %v169
    %327 = vmatprep.subr.mxu0 0.0
    %328 = vmatpush1.msra.mxu0 %v170
    %329 = vmatprep.subr.mxu0 0.0
    %330 = vmatpush1.msra.mxu0 %v171
    %331 = vmatprep.subr.mxu0 0.0
    %332 = vmatpush1.msra.mxu0 %v172
    %333 = vmatprep.subr.mxu0 0.0
    %334 = vmatpush1.msra.mxu0 %v173
    %335 = vmatprep.subr.mxu0 0.0
    %336 = vmatpush1.msra.mxu0 %v174
    %337 = vmatprep.subr.mxu0 0.0
    %338 = vmatpush1.msra.mxu0 %v175
    %339 = vmatprep.subr.mxu0 0.0
    %340 = vmatpush1.msra.mxu0 %v176
    %341 = vmatprep.subr.mxu0 0.0
    %342 = vmatpush1.msra.mxu0 %v177
    %343 = vmatprep.subr.mxu0 0.0
    %344 = vmatpush1.msra.mxu0 %v178
    %345 = vmatprep.subr.mxu0 0.0
    %346 = vmatpush1.msra.mxu0 %v179
    %347 = vmatprep.subr.mxu0 0.0
    %348 = vmatpush1.msra.mxu0 %v180
    %349 = vmatprep.subr.mxu0 0.0
    %350 = vmatpush1.msra.mxu0 %v181
    %351 = vmatprep.subr.mxu0 0.0
    %352 = vmatpush1.msra.mxu0 %v182
    %353 = vmatprep.subr.mxu0 0.0
    %354 = vmatpush1.msra.mxu0 %v183
    %355 = vmatprep.subr.mxu0 0.0
    %356 = vmatpush1.msra.mxu0 %v184
    %357 = vmatprep.subr.mxu0 0.0
    %358 = vmatpush1.msra.mxu0 %v185
    %359 = vmatprep.subr.mxu0 0.0
    %360 = vmatpush1.msra.mxu0 %v186
    %361 = vmatprep.mubr.f32.mxu0 %v100
    %362 = vmatmul.mubr.f32.gmra.mrb[0].mxu0 %v99
    %v363 = vpop.f32.mrb[0].mxu0
    %v364 = vadd.f32 0.0, %v363
    %v365 = vpop.f32.mrb[0].mxu0
    %366 = vmatprep.mubr.f32.mxu0 %v108
    %367 = vmatmul.mubr.f32.gmra.mrb[0].mxu0 %v107
    %v368 = vpop.f32.mrb[0].mxu0
    %v369 = vadd.f32 0.0, %v368
    %v370 = vpop.f32.mrb[0].mxu0
    %371 = vmatprep.mubr.f32.mxu0 %v116
    %372 = vmatmul.mubr.f32.gmra.mrb[0].mxu0 %v115
    %v373 = vpop.f32.mrb[0].mxu0
    %v374 = vadd.f32 0.0, %v373
    %v375 = vpop.f32.mrb[0].mxu0
    %376 = vmatprep.mubr.f32.mxu0 %v124
    %377 = vmatmul.mubr.f32.gmra.mrb[0].mxu0 %v123
    %v378 = vpop.f32.mrb[0].mxu0
    %v379 = vadd.f32 0.0, %v378
    %v380 = vpop.f32.mrb[0].mxu0
    %381 = vmatprep.mubr.f32.mxu0 %v132
    %382 = vmatmul.mubr.f32.gmra.mrb[0].mxu0 %v131
    %v383 = vpop.f32.mrb[0].mxu0
    %v384 = vadd.f32 0.0, %v383
    %v385 = vpop.f32.mrb[0].mxu0
    %386 = vmatprep.mubr.f32.mxu0 %v140
    %387 = vmatmul.mubr.f32.gmra.mrb[0].mxu0 %v139
    %v388 = vpop.f32.mrb[0].mxu0
    %v389 = vadd.f32 0.0, %v388
    %v390 = vpop.f32.mrb[0].mxu0
    %391 = vmatprep.mubr.f32.mxu0 %v148
    %392 = vmatmul.mubr.f32.gmra.mrb[0].mxu0 %v147
    %v393 = vpop.f32.mrb[0].mxu0
    %v394 = vadd.f32 0.0, %v393
    %v395 = vpop.f32.mrb[0].mxu0
    %396 = vdwg.mxu0
    %397 = vmatprep.subr.mxu0 0.0
    %398 = vmatpush1.msra.mxu0 %v187
    %399 = vmatprep.subr.mxu0 0.0
    %400 = vmatpush1.msra.mxu0 %v188
    %401 = vmatprep.subr.mxu0 0.0
    %402 = vmatpush1.msra.mxu0 %v189
    %403 = vmatprep.subr.mxu0 0.0
    %404 = vmatpush1.msra.mxu0 %v190
    %405 = vmatprep.subr.mxu0 0.0
    %406 = vmatpush1.msra.mxu0 %v191
    %407 = vmatprep.subr.mxu0 0.0
    %408 = vmatpush1.msra.mxu0 %v192
    %409 = vmatprep.subr.mxu0 0.0
    %410 = vmatpush1.msra.mxu0 %v193
    %411 = vmatprep.subr.mxu0 0.0
    %412 = vmatpush1.msra.mxu0 %v194
    %413 = vmatprep.subr.mxu0 0.0
    %414 = vmatpush1.msra.mxu0 %v195
    %415 = vmatprep.subr.mxu0 0.0
    %416 = vmatpush1.msra.mxu0 %v196
    %417 = vmatprep.subr.mxu0 0.0
    %418 = vmatpush1.msra.mxu0 %v197
    %419 = vmatprep.subr.mxu0 0.0
    %420 = vmatpush1.msra.mxu0 %v198
    %421 = vmatprep.subr.mxu0 0.0
    %422 = vmatpush1.msra.mxu0 %v199
    %423 = vmatprep.subr.mxu0 0.0
    %424 = vmatpush1.msra.mxu0 %v200
    %425 = vmatprep.subr.mxu0 0.0
    %426 = vmatpush1.msra.mxu0 %v201
    %427 = vmatprep.subr.mxu0 0.0
    %428 = vmatpush1.msra.mxu0 %v202
    %429 = vmatprep.subr.mxu0 0.0
    %430 = vmatpush1.msra.mxu0 %v203
    %431 = vmatprep.subr.mxu0 0.0
    %432 = vmatpush1.msra.mxu0 %v204
    %433 = vmatprep.subr.mxu0 0.0
    %434 = vmatpush1.msra.mxu0 %v205
    %435 = vmatprep.subr.mxu0 0.0
    %436 = vmatpush1.msra.mxu0 %v206
    %437 = vmatprep.subr.mxu0 0.0
    %438 = vmatpush1.msra.mxu0 %v207
    %439 = vmatprep.subr.mxu0 0.0
    %440 = vmatpush1.msra.mxu0 %v208
    %441 = vmatprep.subr.mxu0 0.0
    %442 = vmatpush1.msra.mxu0 %v209
    %443 = vmatprep.subr.mxu0 0.0
    %444 = vmatpush1.msra.mxu0 %v210
    %445 = vmatprep.subr.mxu0 0.0
    %446 = vmatpush1.msra.mxu0 %v211
    %447 = vmatprep.subr.mxu0 0.0
    %448 = vmatpush1.msra.mxu0 %v212
    %449 = vmatprep.subr.mxu0 0.0
    %450 = vmatpush1.msra.mxu0 %v213
    %451 = vmatprep.subr.mxu0 0.0
    %452 = vmatpush1.msra.mxu0 %v214
    %453 = vmatprep.subr.mxu0 0.0
    %454 = vmatpush1.msra.mxu0 %v215
    %455 = vmatprep.subr.mxu0 0.0
    %456 = vmatpush1.msra.mxu0 %v216
    %457 = vmatprep.subr.mxu0 0.0
    %458 = vmatpush1.msra.mxu0 %v217
    %459 = vmatprep.subr.mxu0 0.0
    %460 = vmatpush1.msra.mxu0 %v218
    %461 = vmatprep.mubr.f32.mxu0 %v102
    %462 = vmatmul.mubr.f32.gmra.mrb[0].mxu0 %v101
    %v463 = vpop.f32.mrb[0].mxu0
    %v464 = vadd.f32 %v364, %v463
    %v465 = vpop.f32.mrb[0].mxu0
    %466 = vmatprep.mubr.f32.mxu0 %v110
    %467 = vmatmul.mubr.f32.gmra.mrb[0].mxu0 %v109
    %v468 = vpop.f32.mrb[0].mxu0
    %v469 = vadd.f32 %v369, %v468
    %v470 = vpop.f32.mrb[0].mxu0
    %471 = vmatprep.mubr.f32.mxu0 %v118
    %472 = vmatmul.mubr.f32.gmra.mrb[0].mxu0 %v117
    %v473 = vpop.f32.mrb[0].mxu0
    %v474 = vadd.f32 %v374, %v473
    %v475 = vpop.f32.mrb[0].mxu0
    %476 = vmatprep.mubr.f32.mxu0 %v126
    %477 = vmatmul.mubr.f32.gmra.mrb[0].mxu0 %v125
    %v478 = vpop.f32.mrb[0].mxu0
    %v479 = vadd.f32 %v379, %v478
    %v480 = vpop.f32.mrb[0].mxu0
    %481 = vmatprep.mubr.f32.mxu0 %v134
    %482 = vmatmul.mubr.f32.gmra.mrb[0].mxu0 %v133
    %v483 = vpop.f32.mrb[0].mxu0
    %v484 = vadd.f32 %v384, %v483
    %v485 = vpop.f32.mrb[0].mxu0
    %486 = vmatprep.mubr.f32.mxu0 %v142
    %487 = vmatmul.mubr.f32.gmra.mrb[0].mxu0 %v141
    %v488 = vpop.f32.mrb[0].mxu0
    %v489 = vadd.f32 %v389, %v488
    %v490 = vpop.f32.mrb[0].mxu0
    %491 = vmatprep.mubr.f32.mxu0 %v150
    %492 = vmatmul.mubr.f32.gmra.mrb[0].mxu0 %v149
    %v493 = vpop.f32.mrb[0].mxu0
    %v494 = vadd.f32 %v394, %v493
    %v495 = vpop.f32.mrb[0].mxu0
    %496 = vdwg.mxu0
    %497 = vmatprep.subr.mxu0 0.0
    %498 = vmatpush1.msra.mxu0 %v219
    %499 = vmatprep.subr.mxu0 0.0
    %500 = vmatpush1.msra.mxu0 %v220
    %501 = vmatprep.subr.mxu0 0.0
    %502 = vmatpush1.msra.mxu0 %v221
    %503 = vmatprep.subr.mxu0 0.0
    %504 = vmatpush1.msra.mxu0 %v222
    %505 = vmatprep.subr.mxu0 0.0
    %506 = vmatpush1.msra.mxu0 %v223
    %507 = vmatprep.subr.mxu0 0.0
    %508 = vmatpush1.msra.mxu0 %v224
    %509 = vmatprep.subr.mxu0 0.0
    %510 = vmatpush1.msra.mxu0 %v225
    %511 = vmatprep.subr.mxu0 0.0
    %512 = vmatpush1.msra.mxu0 %v226
    %513 = vmatprep.subr.mxu0 0.0
    %514 = vmatpush1.msra.mxu0 %v227
    %515 = vmatprep.subr.mxu0 0.0
    %516 = vmatpush1.msra.mxu0 %v228
    %517 = vmatprep.subr.mxu0 0.0
    %518 = vmatpush1.msra.mxu0 %v229
    %519 = vmatprep.subr.mxu0 0.0
    %520 = vmatpush1.msra.mxu0 %v230
    %521 = vmatprep.subr.mxu0 0.0
    %522 = vmatpush1.msra.mxu0 %v231
    %523 = vmatprep.subr.mxu0 0.0
    %524 = vmatpush1.msra.mxu0 %v232
    %525 = vmatprep.subr.mxu0 0.0
    %526 = vmatpush1.msra.mxu0 %v233
    %527 = vmatprep.subr.mxu0 0.0
    %528 = vmatpush1.msra.mxu0 %v234
    %529 = vmatprep.subr.mxu0 0.0
    %530 = vmatpush1.msra.mxu0 %v235
    %531 = vmatprep.subr.mxu0 0.0
    %532 = vmatpush1.msra.mxu0 %v236
    %533 = vmatprep.subr.mxu0 0.0
    %534 = vmatpush1.msra.mxu0 %v237
    %535 = vmatprep.subr.mxu0 0.0
    %536 = vmatpush1.msra.mxu0 %v238
    %537 = vmatprep.subr.mxu0 0.0
    %538 = vmatpush1.msra.mxu0 %v239
    %539 = vmatprep.subr.mxu0 0.0
    %540 = vmatpush1.msra.mxu0 %v240
    %541 = vmatprep.subr.mxu0 0.0
    %542 = vmatpush1.msra.mxu0 %v241
    %543 = vmatprep.subr.mxu0 0.0
    %544 = vmatpush1.msra.mxu0 %v242
    %545 = vmatprep.subr.mxu0 0.0
    %546 = vmatpush1.msra.mxu0 %v243
    %547 = vmatprep.subr.mxu0 0.0
    %548 = vmatpush1.msra.mxu0 %v244
    %549 = vmatprep.subr.mxu0 0.0
    %550 = vmatpush1.msra.mxu0 %v245
    %551 = vmatprep.subr.mxu0 0.0
    %552 = vmatpush1.msra.mxu0 %v246
    %553 = vmatprep.subr.mxu0 0.0
    %554 = vmatpush1.msra.mxu0 %v247
    %555 = vmatprep.subr.mxu0 0.0
    %556 = vmatpush1.msra.mxu0 %v248
    %557 = vmatprep.subr.mxu0 0.0
    %558 = vmatpush1.msra.mxu0 %v249
    %559 = vmatprep.subr.mxu0 0.0
    %560 = vmatpush1.msra.mxu0 %v250
    %561 = vmatprep.mubr.f32.mxu0 %v104
    %562 = vmatmul.mubr.f32.gmra.mrb[0].mxu0 %v103
    %v563 = vpop.f32.mrb[0].mxu0
    %v564 = vadd.f32 %v464, %v563
    %v565 = vpop.f32.mrb[0].mxu0
    %566 = vmatprep.mubr.f32.mxu0 %v112
    %567 = vmatmul.mubr.f32.gmra.mrb[0].mxu0 %v111
    %v568 = vpop.f32.mrb[0].mxu0
    %v569 = vadd.f32 %v469, %v568
    %v570 = vpop.f32.mrb[0].mxu0
    %571 = vmatprep.mubr.f32.mxu0 %v120
    %572 = vmatmul.mubr.f32.gmra.mrb[0].mxu0 %v119
    %v573 = vpop.f32.mrb[0].mxu0
    %v574 = vadd.f32 %v474, %v573
    %v575 = vpop.f32.mrb[0].mxu0
    %576 = vmatprep.mubr.f32.mxu0 %v128
    %577 = vmatmul.mubr.f32.gmra.mrb[0].mxu0 %v127
    %v578 = vpop.f32.mrb[0].mxu0
    %v579 = vadd.f32 %v479, %v578
    %v580 = vpop.f32.mrb[0].mxu0
    %581 = vmatprep.mubr.f32.mxu0 %v136
    %582 = vmatmul.mubr.f32.gmra.mrb[0].mxu0 %v135
    %v583 = vpop.f32.mrb[0].mxu0
    %v584 = vadd.f32 %v484, %v583
    %v585 = vpop.f32.mrb[0].mxu0
    %586 = vmatprep.mubr.f32.mxu0 %v144
    %587 = vmatmul.mubr.f32.gmra.mrb[0].mxu0 %v143
    %v588 = vpop.f32.mrb[0].mxu0
    %v589 = vadd.f32 %v489, %v588
    %v590 = vpop.f32.mrb[0].mxu0
    %591 = vmatprep.mubr.f32.mxu0 %v152
    %592 = vmatmul.mubr.f32.gmra.mrb[0].mxu0 %v151
    %v593 = vpop.f32.mrb[0].mxu0
    %v594 = vadd.f32 %v494, %v593
    %v595 = vpop.f32.mrb[0].mxu0
    %596 = vdwg.mxu0
    %597 = vmatprep.subr.mxu0 0.0
    %598 = vmatpush1.msra.mxu0 %v251
    %599 = vmatprep.subr.mxu0 0.0
    %600 = vmatpush1.msra.mxu0 %v252
    %601 = vmatprep.subr.mxu0 0.0
    %602 = vmatpush1.msra.mxu0 %v253
    %603 = vmatprep.subr.mxu0 0.0
    %604 = vmatpush1.msra.mxu0 %v254
    %605 = vmatprep.subr.mxu0 0.0
    %606 = vmatpush1.msra.mxu0 %v255
    %607 = vmatprep.subr.mxu0 0.0
    %608 = vmatpush1.msra.mxu0 %v256
    %609 = vmatprep.subr.mxu0 0.0
    %610 = vmatpush1.msra.mxu0 %v257
    %611 = vmatprep.subr.mxu0 0.0
    %612 = vmatpush1.msra.mxu0 %v258
    %613 = vmatprep.subr.mxu0 0.0
    %614 = vmatpush1.msra.mxu0 %v259
    %615 = vmatprep.subr.mxu0 0.0
    %616 = vmatpush1.msra.mxu0 %v260
    %617 = vmatprep.subr.mxu0 0.0
    %618 = vmatpush1.msra.mxu0 %v261
    %619 = vmatprep.subr.mxu0 0.0
    %620 = vmatpush1.msra.mxu0 %v262
    %621 = vmatprep.subr.mxu0 0.0
    %622 = vmatpush1.msra.mxu0 %v263
    %623 = vmatprep.subr.mxu0 0.0
    %624 = vmatpush1.msra.mxu0 %v264
    %625 = vmatprep.subr.mxu0 0.0
    %626 = vmatpush1.msra.mxu0 %v265
    %627 = vmatprep.subr.mxu0 0.0
    %628 = vmatpush1.msra.mxu0 %v266
    %629 = vmatprep.subr.mxu0 0.0
    %630 = vmatpush1.msra.mxu0 %v267
    %631 = vmatprep.subr.mxu0 0.0
    %632 = vmatpush1.msra.mxu0 %v268
    %633 = vmatprep.subr.mxu0 0.0
    %634 = vmatpush1.msra.mxu0 %v269
    %635 = vmatprep.subr.mxu0 0.0
    %636 = vmatpush1.msra.mxu0 %v270
    %637 = vmatprep.subr.mxu0 0.0
    %638 = vmatpush1.msra.mxu0 %v271
    %639 = vmatprep.subr.mxu0 0.0
    %640 = vmatpush1.msra.mxu0 %v272
    %641 = vmatprep.subr.mxu0 0.0
    %642 = vmatpush1.msra.mxu0 %v273
    %643 = vmatprep.subr.mxu0 0.0
    %644 = vmatpush1.msra.mxu0 %v274
    %645 = vmatprep.subr.mxu0 0.0
    %646 = vmatpush1.msra.mxu0 0.0
    %647 = vmatprep.subr.mxu0 0.0
    %648 = vmatpush1.msra.mxu0 0.0
    %649 = vmatprep.subr.mxu0 0.0
    %650 = vmatpush1.msra.mxu0 0.0
    %651 = vmatprep.subr.mxu0 0.0
    %652 = vmatpush1.msra.mxu0 0.0
    %653 = vmatprep.subr.mxu0 0.0
    %654 = vmatpush1.msra.mxu0 0.0
    %655 = vmatprep.subr.mxu0 0.0
    %656 = vmatpush1.msra.mxu0 0.0
    %657 = vmatprep.subr.mxu0 0.0
    %658 = vmatpush1.msra.mxu0 0.0
    %659 = vmatprep.subr.mxu0 0.0
    %660 = vmatpush1.msra.mxu0 0.0
    %661 = vmatprep.mubr.f32.mxu0 %v277
    %662 = vmatmul.mubr.f32.gmra.mrb[0].mxu0 %v105
    %v663 = vpop.f32.mrb[0].mxu0
    %v664 = vadd.f32 %v564, %v663
    %v665 = vpop.f32.mrb[0].mxu0
    %666 = vmatprep.mubr.f32.mxu0 %v280
    %667 = vmatmul.mubr.f32.gmra.mrb[0].mxu0 %v113
    %v668 = vpop.f32.mrb[0].mxu0
    %v669 = vadd.f32 %v569, %v668
    %v670 = vpop.f32.mrb[0].mxu0
    %671 = vmatprep.mubr.f32.mxu0 %v283
    %672 = vmatmul.mubr.f32.gmra.mrb[0].mxu0 %v121
    %v673 = vpop.f32.mrb[0].mxu0
    %v674 = vadd.f32 %v574, %v673
    %v675 = vpop.f32.mrb[0].mxu0
    %676 = vmatprep.mubr.f32.mxu0 %v286
    %677 = vmatmul.mubr.f32.gmra.mrb[0].mxu0 %v129
    %v678 = vpop.f32.mrb[0].mxu0
    %v679 = vadd.f32 %v579, %v678
    %v680 = vpop.f32.mrb[0].mxu0
    %681 = vmatprep.mubr.f32.mxu0 %v289
    %682 = vmatmul.mubr.f32.gmra.mrb[0].mxu0 %v137
    %v683 = vpop.f32.mrb[0].mxu0
    %v684 = vadd.f32 %v584, %v683
    %v685 = vpop.f32.mrb[0].mxu0
    %686 = vmatprep.mubr.f32.mxu0 %v292
    %687 = vmatmul.mubr.f32.gmra.mrb[0].mxu0 %v145
    %v688 = vpop.f32.mrb[0].mxu0
    %v689 = vadd.f32 %v589, %v688
    %v690 = vpop.f32.mrb[0].mxu0
    %691 = vmatprep.mubr.f32.mxu0 %v295
    %692 = vmatmul.mubr.f32.gmra.mrb[0].mxu0 %v153
    %v693 = vpop.f32.mrb[0].mxu0
    %v694 = vadd.f32 %v594, %v693
    %v695 = vpop.f32.mrb[0].mxu0
    %696 = vdwg.mxu0
    %v697 = vadd.f32 %v664, %v669
    %v698 = vadd.f32 %v697, %v674
    %v699 = vadd.f32 %v698, %v679
    %v700 = vadd.f32 %v699, %v684
    %v701 = vadd.f32 %v700, %v689
    %vm702 = vcmask 1040384
    %v703 = vsel %vm702, %v694, 0.0
    %v704 = vadd.f32 %v701, %v703
    %v705 = vrot.slane %v704, 4
    %v706 = vadd.f32 %v704, %v705
    %v707 = vrot.slane %v706, 2
    %v708 = vadd.f32 %v706, %v707
    %v709 = vrot.slane %v708, 1
    %v710 = vadd.f32 %v708, %v709
    %v711 = vrcp.pop 49.0
    %v712 = vmul.f32 %v710, %v711
    %v713 = vsub.f32 %v664, %v712
    %v714 = vsub.f32 %v669, %v712
    %v715 = vsub.f32 %v674, %v712
    %v716 = vsub.f32 %v679, %v712
    %v717 = vsub.f32 %v684, %v712
    %v718 = vsub.f32 %v689, %v712
    %v719 = vsub.f32 %v694, %v712
    %v720 = vmul.f32 %v713, %v713
    %v721 = vmul.f32 %v714, %v714
    %v722 = vmul.f32 %v715, %v715
    %v723 = vmul.f32 %v716, %v716
    %v724 = vmul.f32 %v717, %v717
    %v725 = vmul.f32 %v718, %v718
    %v726 = vmul.f32 %v719, %v719
    %v727 = vadd.f32 %v720, %v721
    %v728 = vadd.f32 %v727, %v722
    %v729 = vadd.f32 %v728, %v723
    %v730 = vadd.f32 %v729, %v724
    %v731 = vadd.f32 %v730, %v725
    %v732 = vsel %vm702, %v726, 0.0
    %v733 = vadd.f32 %v731, %v732
    %v734 = vrot.slane %v733, 4
    %v735 = vadd.f32 %v733, %v734
    %v736 = vrot.slane %v735, 2
    %v737 = vadd.f32 %v735, %v736
    %v738 = vrot.slane %v737, 1
    %v739 = vadd.f32 %v737, %v738
    %v740 = vmul.f32 %v739, %v711
    %v741 = vld [vmem:[%s2] sm:$0x3]
    %v742 = vadd.f32 %v740, 1e-05
    %v743 = vrsqrt.pop %v742
    %v744 = vmul.f32 %v741, %v743
    %v745 = vlaneseq
    %v746 = vshrl.u32 %v745, 7
    %v747 = vsub.s32 0, %v746
    %v748 = vrot.slane %v744, %v747
    %v749 = vmul.f32 %v713, %v748
    %v750 = vmul.f32 %v714, %v748
    %v751 = vmul.f32 %v715, %v748
    %v752 = vmul.f32 %v716, %v748
    %v753 = vmul.f32 %v717, %v748
    %v754 = vmul.f32 %v718, %v748
    %v755 = vmul.f32 %v719, %v748
    %v756 = vlaneseq
    %v757 = vshrl.u32 %v756, 7
    %v758 = vsub.s32 1, %v757
    %v759 = vrot.slane %v741, %v758
    %v760 = vadd.f32 %v749, %v759
    %v761 = vadd.f32 %v750, %v759
    %v762 = vadd.f32 %v751, %v759
    %v763 = vadd.f32 %v752, %v759
    %v764 = vadd.f32 %v753, %v759
    %v765 = vadd.f32 %v754, %v759
    %v766 = vadd.f32 %v755, %v759
    %767 = vst [vmem:[#allocation7] sm:$0xff] %v760
    %768 = vst [vmem:[#allocation7 + $0x8] sm:$0xff] %v761
    %769 = vst [vmem:[#allocation7 + $0x10] sm:$0xff] %v762
    %770 = vst [vmem:[#allocation7 + $0x18] sm:$0xff] %v763
    %771 = vst [vmem:[#allocation7 + $0x20] sm:$0xff] %v764
    %772 = vst [vmem:[#allocation7 + $0x28] sm:$0xff] %v765
    %773 = vst [vmem:[#allocation7 + $0x30] sm:$0x1] %v766
    // Predicated region
    $region22: #{tpu_custom_call.1} parent=1 // pred_check
      _
    $region23: #{tpu_custom_call.1} parent=1 // pred_check_branch
      %775 = sbr.rel (0) target = $region25
    $region24: #{tpu_custom_call.1} parent=1 // pred_region
      %s777 = ssub.s32 896, 896
      %778 = vsyncadd [#allocation4], %s777
      %s779 = sshll.u32 [#allocation7], 4
      %s780 = int_to_ptr.vmem [resolvable:$true] %s779
      %785 = dma.vmem_to_hbm [thread:$0]  %s780, 896, %s3, [#allocation4], 128, 128, 8
    $region25: #{tpu_custom_call.1} parent=1 // pred_fallthru
      _
    // Predicated region
    $region26: #{tpu_custom_call.1} parent=1 // pred_check
      _
    $region27: #{tpu_custom_call.1} parent=1 // pred_check_branch
      %787 = sbr.rel (0) target = $region29
    $region28: #{tpu_custom_call.1} parent=1 // pred_region
      %788 = dma.done [#allocation4], 896
    $region29: #{tpu_custom_call.1} parent=1 // pred_fallthru
      _
    %789 = vsyncpa [#allocation3], 1
    %790 = vsyncpa [#allocation6], 1
    %791 = vsyncpa [#allocation4], 1

</llo_original>
